<compile_context>
chip_gen: v5e
topology: v5e:2x2
jax: 0.10.0
libtpu: 0.0.40
codegen_flags: <defaults>
</compile_context>

<pallas_src>
import jax
import jax.numpy as jnp
from jax.experimental import pallas as pl
from jax.experimental.pallas import tpu as pltpu


def _round_up(x, m):
    return (x + m - 1) // m * m


def _conv_stats_kernel(xcol_ref, w_ref, y_ref, sums_ref):
    # xcol_ref: (1, C_in*K, TL) bf16   w_ref: (C_out, C_in*K) bf16
    # y_ref:    (1, C_out, TL) bf16    -- staged conv output (read in pass 2)
    # sums_ref: (1, 1, C_out, 2) f32   -- per-tile [sum, sum of squares]
    y = jnp.dot(w_ref[...], xcol_ref[0],
                preferred_element_type=jnp.float32)           # (C_out, TL) f32
    y_ref[0] = y.astype(y_ref.dtype)                          # bf16 staging
    s1 = jnp.sum(y, axis=1, keepdims=True)                    # (C_out, 1)
    s2 = jnp.sum(y * y, axis=1, keepdims=True)                # (C_out, 1)
    sums_ref[0, 0] = jnp.concatenate([s1, s2], axis=1)        # (C_out, 2)


def _bn_prelu_kernel(y_ref, p_ref, o_ref):
    # y_ref: (1, C_out, TL) bf16 staged conv output
    # p_ref: (C_out, 3) f32 = [scale, shift, alpha]   o_ref: (1, C_out, TL) f32
    y = y_ref[0].astype(jnp.float32)                          # (C_out, TL)
    scale = p_ref[:, 0:1]                                     # (C_out, 1)
    shift = p_ref[:, 1:2]
    alpha = p_ref[:, 2:3]
    y = y * scale + shift                                     # fused BN affine
    o_ref[0] = jnp.where(y >= 0, y, alpha * y).astype(o_ref.dtype)   # PReLU


def conv_batch_chomp_relu(x, weight, bias, gamma, beta, alpha, *,
                          kernel_size, stride, dilation, padding,
                          eps=1e-5, tile_l=512):
    """x: (N, C_in, L) float32.  Returns (N, C_out, L_chomp) float32."""
    N, C_in, L = x.shape
    C_out = weight.shape[0]
    K = kernel_size
    CK = C_in * K
    L_out = (L + 2 * padding - dilation * (K - 1) - 1) // stride + 1
    L_chomp = L_out - padding
    assert padding % 2 == 0, "symmetric chomp needs even padding"
    del bias  # cancelled by BN's mean/var in training mode (see header)

    # ---- glue: im2col (bf16), L padded up to a multiple of the lane tile ----
    tile_l = min(tile_l, _round_up(L_out, 128))
    L_out_p = _round_up(L_out, tile_l)
    n_lt = L_out_p // tile_l

    x_pad = jnp.pad(x, ((0, 0), (0, 0), (padding, padding))).astype(jnp.bfloat16)
    starts = jnp.arange(L_out) * stride                       # (L_out,)
    taps = jnp.arange(K) * dilation                           # (K,)
    idx = taps[:, None] + starts[None, :]                     # (K, L_out)
    x_col = x_pad[:, :, idx].reshape(N, CK, L_out)            # row order c*K + k
    x_col = jnp.pad(x_col, ((0, 0), (0, 0), (0, L_out_p - L_out)))
    w_mat = weight.reshape(C_out, CK).astype(jnp.bfloat16)    # same ordering

    cparams = pltpu.CompilerParams(
        dimension_semantics=("parallel", "parallel"),
        vmem_limit_bytes=48 * 1024 * 1024)

    xcol_spec = pl.BlockSpec((1, CK, tile_l), lambda n, t: (n, 0, t))
    w_spec = pl.BlockSpec((C_out, CK), lambda n, t: (0, 0))
    y_tile_spec = pl.BlockSpec((1, C_out, tile_l), lambda n, t: (n, 0, t))

    # ---- pass 1: tiled conv -> bf16 staged output + per-channel partials ----
    y_stage, sums = pl.pallas_call(
        _conv_stats_kernel,
        out_shape=(jax.ShapeDtypeStruct((N, C_out, L_out_p), jnp.bfloat16),
                   jax.ShapeDtypeStruct((N, n_lt, C_out, 2), jnp.float32)),
        grid=(N, n_lt),
        in_specs=[xcol_spec, w_spec],
        out_specs=[y_tile_spec,
                   pl.BlockSpec((1, 1, C_out, 2), lambda n, t: (n, t, 0, 0))],
        compiler_params=cparams,
    )(x_col, w_mat)

    # ---- glue: per-channel batch stats -> fused affine (tiny, plain JAX) ----
    tot = jnp.sum(sums, axis=(0, 1))                          # (C_out, 2)
    cnt = jnp.float32(N * L_out)       # zero-padded columns contribute exactly 0
    mean = tot[:, 0] / cnt
    var = jnp.maximum(tot[:, 1] / cnt - mean * mean, 0.0)
    scale = gamma.astype(jnp.float32) * jax.lax.rsqrt(var + eps)
    shift = beta.astype(jnp.float32) - mean * scale
    params = jnp.stack([scale, shift, alpha.astype(jnp.float32)], axis=1)

    # ---- pass 2: element-wise BN affine + PReLU, lane-dense f32 stores ----
    y = pl.pallas_call(
        _bn_prelu_kernel,
        out_shape=jax.ShapeDtypeStruct((N, C_out, L_out_p), x.dtype),
        grid=(N, n_lt),
        in_specs=[y_tile_spec,
                  pl.BlockSpec((C_out, 3), lambda n, t: (0, 0))],
        out_specs=y_tile_spec,
        compiler_params=cparams,
    )(y_stage, params)

    # Chomp1d(padding, symm=True) done in the wrapper (keeps kernel stores aligned).
    return y[:, :, padding // 2: padding // 2 + L_chomp]


def _reference(x, weight, bias, gamma, beta, alpha, *, kernel_size, stride,
               dilation, padding, eps=1e-5):
    # Pure-JAX f32 reference faithful to the PyTorch module (conv bias included).
    y = jax.lax.conv_general_dilated(
        x, weight, window_strides=(stride,), padding=[(padding, padding)],
        rhs_dilation=(dilation,),
        dimension_numbers=("NCH", "OIH", "NCH"))
    y = y + bias[None, :, None]
    mean = jnp.mean(y, axis=(0, 2), keepdims=True)
    var = jnp.mean((y - mean) ** 2, axis=(0, 2), keepdims=True)
    y = (y - mean) * jax.lax.rsqrt(var + eps)
    y = y * gamma[None, :, None] + beta[None, :, None]
    if padding > 0:
        y = y[:, :, padding // 2: y.shape[2] - padding // 2]
    return jnp.where(y >= 0, y, alpha[None, :, None] * y)


if __name__ == "__main__":
    # Small TCN-style config: K=3, dilation=1 -> padding=(K-1)*dilation=2 (even).
    N, C_in, C_out, L = 2, 4, 8, 16
    K, stride, dilation = 3, 1, 1
    padding = (K - 1) * dilation

    key = jax.random.PRNGKey(0)
    k_x, k_w, k_b, k_g, k_be, k_a = jax.random.split(key, 6)
    x = jax.random.normal(k_x, (N, C_in, L), jnp.float32)
    weight = jax.random.normal(k_w, (C_out, C_in, K), jnp.float32) * 0.3
    bias = jax.random.normal(k_b, (C_out,), jnp.float32) * 0.1
    gamma = 1.0 + 0.1 * jax.random.normal(k_g, (C_out,), jnp.float32)
    beta = 0.1 * jax.random.normal(k_be, (C_out,), jnp.float32)
    alpha = jnp.full((C_out,), 0.25, jnp.float32)  # PReLU default init

    out = conv_batch_chomp_relu(
        x, weight, bias, gamma, beta, alpha,
        kernel_size=K, stride=stride, dilation=dilation, padding=padding)
    out = jax.block_until_ready(out)

    ref = _reference(
        x, weight, bias, gamma, beta, alpha,
        kernel_size=K, stride=stride, dilation=dilation, padding=padding)

    L_out = (L + 2 * padding - dilation * (K - 1) - 1) // stride + 1
    assert out.shape == (N, C_out, L_out - padding)
    # bf16 MXU inputs + bf16 staging (f32 accumulation / f32 stats) -> compare
    # against f32 reference with a tolerance consistent with bf16 rounding.
    assert jnp.allclose(out, ref, atol=5e-2, rtol=5e-2), "mismatch vs reference"

    print("KERNEL_OK")
</pallas_src>

<mosaic_0001>
module attributes {stable_mosaic.version = 11 : i64} {
  func.func @_conv_stats_kernel(%arg0: i32, %arg1: i32, %arg2: memref<1x12x128xbf16, #tpu.memory_space<vmem>>, %arg3: memref<8x12xbf16, #tpu.memory_space<vmem>>, %arg4: memref<1x8x128xbf16, #tpu.memory_space<vmem>>, %arg5: memref<1x1x8x2xf32, #tpu.memory_space<vmem>>) attributes {dimension_semantics = [#tpu.dimension_semantics<parallel>, #tpu.dimension_semantics<parallel>], iteration_bounds = array<i64: 2, 1>, scalar_prefetch = 0 : i64, scratch_operands = 0 : i64, tpu.core_type = #tpu.core_type<tc>, window_params = [{transform_indices = @transform_0, window_bounds = array<i64: 1, 12, 128>}, {pipeline_mode = #tpu.pipeline_mode<synchronous>, transform_indices = @transform_1, window_bounds = array<i64: 8, 12>}, {transform_indices = @transform_2, window_bounds = array<i64: 1, 8, 128>}, {transform_indices = @transform_3, window_bounds = array<i64: 1, 1, 8, 2>}]} {
    %c0 = arith.constant 0 : index
    %c0_0 = arith.constant 0 : index
    %0 = vector.load %arg3[%c0, %c0_0] : memref<8x12xbf16, #tpu.memory_space<vmem>>, vector<8x12xbf16>
    %c0_1 = arith.constant 0 : index
    %c0_2 = arith.constant 0 : index
    %c0_3 = arith.constant 0 : index
    %1 = vector.load %arg2[%c0_1, %c0_2, %c0_3] : memref<1x12x128xbf16, #tpu.memory_space<vmem>>, vector<1x12x128xbf16>
    %2 = vector.shape_cast %1 : vector<1x12x128xbf16> to vector<12x128xbf16>
    %cst = arith.constant dense<0.000000e+00> : vector<8x128xf32>
    %3 = tpu.matmul %0, %2, %cst {dimension_numbers = #tpu.dot_dimension_numbers<[1], [0], [0], [1], [0, 0, 1, 1], [], []>} : vector<8x12xbf16>, vector<12x128xbf16>, vector<8x128xf32> -> vector<8x128xf32>
    %4 = arith.truncf %3 : vector<8x128xf32> to vector<8x128xbf16>
    %c0_4 = arith.constant 0 : index
    %c0_5 = arith.constant 0 : index
    %c0_6 = arith.constant 0 : index
    %5 = vector.load %arg4[%c0_4, %c0_5, %c0_6] : memref<1x8x128xbf16, #tpu.memory_space<vmem>>, vector<1x8x128xbf16>
    %6 = vector.shape_cast %5 : vector<1x8x128xbf16> to vector<8x128xbf16>
    %7 = vector.shape_cast %4 : vector<8x128xbf16> to vector<1x8x128xbf16>
    tpu.vector_store %arg4[%c0_4, %c0_5, %c0_6], %7 {strides = array<i32>} : memref<1x8x128xbf16, #tpu.memory_space<vmem>>, vector<1x8x128xbf16>,
    %cst_7 = arith.constant dense<0.000000e+00> : vector<8xf32>
    %8 = vector.multi_reduction <add>, %3, %cst_7 [1] : vector<8x128xf32> to vector<8xf32>
    %9 = vector.shape_cast %8 : vector<8xf32> to vector<8x1xf32>
    %10 = arith.mulf %3, %3 : vector<8x128xf32>
    %cst_8 = arith.constant dense<0.000000e+00> : vector<8xf32>
    %11 = vector.multi_reduction <add>, %10, %cst_8 [1] : vector<8x128xf32> to vector<8xf32>
    %12 = vector.shape_cast %11 : vector<8xf32> to vector<8x1xf32>
    %13 = tpu.concatenate %9, %12 in 1 : vector<8x1xf32>, vector<8x1xf32> -> vector<8x2xf32>
    %c0_9 = arith.constant 0 : index
    %c0_10 = arith.constant 0 : index
    %c0_11 = arith.constant 0 : index
    %c0_12 = arith.constant 0 : index
    %14 = vector.load %arg5[%c0_9, %c0_10, %c0_11, %c0_12] : memref<1x1x8x2xf32, #tpu.memory_space<vmem>>, vector<1x1x8x2xf32>
    %15 = vector.shape_cast %14 : vector<1x1x8x2xf32> to vector<8x2xf32>
    %16 = vector.shape_cast %13 : vector<8x2xf32> to vector<1x1x8x2xf32>
    tpu.vector_store %arg5[%c0_9, %c0_10, %c0_11, %c0_12], %16 {strides = array<i32>} : memref<1x1x8x2xf32, #tpu.memory_space<vmem>>, vector<1x1x8x2xf32>,
    return
  }
  func.func @transform_0(%arg0: i32, %arg1: i32) -> (i32, i32, i32) {
    %c0_i32 = arith.constant 0 : i32
    %c0_i32_0 = arith.constant 0 : i32
    return %arg0, %c0_i32, %arg1 : i32, i32, i32
  }
  func.func @transform_1(%arg0: i32, %arg1: i32) -> (i32, i32) {
    %c0_i32 = arith.constant 0 : i32
    %c0_i32_0 = arith.constant 0 : i32
    %c0_i32_1 = arith.constant 0 : i32
    return %c0_i32, %c0_i32_0 : i32, i32
  }
  func.func @transform_2(%arg0: i32, %arg1: i32) -> (i32, i32, i32) {
    %c0_i32 = arith.constant 0 : i32
    %c0_i32_0 = arith.constant 0 : i32
    return %arg0, %c0_i32, %arg1 : i32, i32, i32
  }
  func.func @transform_3(%arg0: i32, %arg1: i32) -> (i32, i32, i32, i32) {
    %c0_i32 = arith.constant 0 : i32
    %c0_i32_0 = arith.constant 0 : i32
    %c0_i32_1 = arith.constant 0 : i32
    return %arg0, %arg1, %c0_i32, %c0_i32_0 : i32, i32, i32, i32
  }
}

</mosaic_0001>

<llo_original>
// kernel: tpu_custom_call.1
$region0: #{tpu_custom_call.1}
  #allocation0 [shape = 'u32[]', space=smem, size = 0x4, offset = 0x4, fixed_abs, tag = 'smem constant byte address 0x4 - core index']
  #allocation1 [shape = 'u32[72,128]{1,0:T(1,128)}', space=vmem, size = 0x9000, scoped, tag = 'internal scratch']
  %s0 = inlined_call_operand.vmem [shape: bf16[2,12,128], index: 0, kind: input, shape index: {}]
  %s1 = inlined_call_operand.vmem [shape: bf16[8,12], index: 1, kind: input, shape index: {}]
  %s2 = inlined_call_operand.hbm [shape: bf16[2,8,128], index: 2, kind: output, shape index: {0}]
  %s3 = inlined_call_operand.vmem [shape: f32[2,1,8,2], index: 3, kind: output, shape index: {1}]
  %4 = xla_tuple %s2, %s3
  %s5 = sld [smem:[#allocation0]]
  $region49: #{tpu_custom_call.1} parent=0
    _
  %s7 = ssub.s32 1, %s5
  %s8 = scalar_select 0, %s7, %s5
  $region1: #{tpu_custom_call.1} parent=0
    #allocation2 [shape = 'u8[4096]{0}', space=vmem, size = 0x1000, scoped, tag = 'output window, operand 0']
    #allocation3 [shape = 's32[2]{0}', space=sflag, size = 0x8, scoped, tag = 'scoped memory for tpu_custom_call.1']
    %9 = vsyncpa [#allocation3], 0
    %s10 = scalar_lea.sflag [#allocation3], 1
    %11 = vsyncpa %s10, 0
    loop: start=0, step=1, limit=4
    $region2: #{tpu_custom_call.1} parent=1 // loop_pre_header
      _
    $region3: #{tpu_custom_call.1} parent=1 // loop_header
      %s13 = sphi 0, %s17
      %p14 = scmp.ge.s32.totalorder %s13, 4
      %s20 = sphi 0, %s32
      %s21 = sphi 0, %s28
      %s22 = sphi 0, %s20
      %s23 = sphi 0, %s21
      %s24 = sphi 0, %s22
      %s25 = sphi 0, %s23
      %s37 = sphi 0, %s39
      %s40 = sphi 0, %s37
      %s41 = sphi 0, %s40
      %s57 = sphi 0, %s41
      %s61 = sphi 0, %s61
      %s63 = sphi 0, %s61
      %s64 = sphi 0, %s63
      %s78 = sphi 0, %s64
      %s86 = sphi 0, %s88
      %s89 = sphi 0, %s86
      %s90 = sphi 0, %s89
      %s106 = sphi 0, %s90
      %s114 = sphi 0, %s116
      %s117 = sphi 0, %s114
      %s118 = sphi 0, %s117
      %s134 = sphi 0, %s118
    $region4: #{tpu_custom_call.1} parent=1 // loop_header_branch
      %16 = sbr.rel (%p14) target = $region8
    $region5: #{tpu_custom_call.1} parent=1 // loop_body
      %s18 = ssub.s32 %s13, 1
      %s19 = ssub.s32 %s13, 2
      %s26 = sadd.s32 1, %s21
      %p27 = scmp.ge.s32.totalorder %s26, 1
      %s28 = scalar_select %p27, 0, %s26
      %s29 = sadd.s32 1, %s20
      %s30 = scalar_select %p27, %s29, %s20
      %p31 = scmp.ge.s32.totalorder %s30, 2
      %s32 = scalar_select %p31, 0, %s30
      %s33 = ssub.s32 %s20, %s32
      %s34 = ssub.s32 %s21, %s28
      %s35 = sor.u32 %s33, %s34
      %p36 = scmp.eq.s32.totalorder %s35, 0
      %s38 = sadd.s32 %s37, 1
      %s39 = scalar_select %p36, %s37, %s38
      %p42 = pneg %p36
      %p43 = scmp.eq.s32.totalorder %s13, 1
      %p44 = por %p42, %p43
      %p45 = scmp.ne.s32.totalorder %s37, %s40
      %p46 = scmp.eq.s32.totalorder %s13, 0
      %p47 = por %p45, %p46
      %p48 = scmp.ne.s32.totalorder %s37, %s40
      %p49 = scmp.eq.s32.totalorder %s18, 1
      %p50 = por %p48, %p49
      %p51 = scmp.ne.s32.totalorder %s40, %s41
      %p52 = scmp.eq.s32.totalorder %s18, 0
      %p53 = por %p51, %p52
      %p54 = scmp.ne.s32.totalorder %s40, %s41
      %p55 = scmp.eq.s32.totalorder %s19, 1
      %p56 = por %p54, %p55
      %p58 = scmp.ne.s32.totalorder %s41, %s57
      %p59 = scmp.eq.s32.totalorder %s19, 0
      %p60 = por %p58, %p59
      %s62 = sadd.s32 %s61, 1
      %p65 = scmp.eq.s32.totalorder %s13, 1
      %p66 = scmp.ne.s32.totalorder %s61, %s63
      %p67 = scmp.eq.s32.totalorder %s13, 0
      %p68 = por %p66, %p67
      %p69 = scmp.ne.s32.totalorder %s61, %s63
      %p70 = scmp.eq.s32.totalorder %s18, 1
      %p71 = por %p69, %p70
      %p72 = scmp.ne.s32.totalorder %s63, %s64
      %p73 = scmp.eq.s32.totalorder %s18, 0
      %p74 = por %p72, %p73
      %p75 = scmp.ne.s32.totalorder %s63, %s64
      %p76 = scmp.eq.s32.totalorder %s19, 1
      %p77 = por %p75, %p76
      %p79 = scmp.ne.s32.totalorder %s64, %s78
      %p80 = scmp.eq.s32.totalorder %s19, 0
      %p81 = por %p79, %p80
      %s82 = ssub.s32 %s20, %s32
      %s83 = ssub.s32 %s21, %s28
      %s84 = sor.u32 %s82, %s83
      %p85 = scmp.eq.s32.totalorder %s84, 0
      %s87 = sadd.s32 %s86, 1
      %s88 = scalar_select %p85, %s86, %s87
      %p91 = pneg %p85
      %p92 = scmp.eq.s32.totalorder %s13, 1
      %p93 = por %p91, %p92
      %p94 = scmp.ne.s32.totalorder %s86, %s89
      %p95 = scmp.eq.s32.totalorder %s13, 0
      %p96 = por %p94, %p95
      %p97 = scmp.ne.s32.totalorder %s86, %s89
      %p98 = scmp.eq.s32.totalorder %s18, 1
      %p99 = por %p97, %p98
      %p100 = scmp.ne.s32.totalorder %s89, %s90
      %p101 = scmp.eq.s32.totalorder %s18, 0
      %p102 = por %p100, %p101
      %p103 = scmp.ne.s32.totalorder %s89, %s90
      %p104 = scmp.eq.s32.totalorder %s19, 1
      %p105 = por %p103, %p104
      %p107 = scmp.ne.s32.totalorder %s90, %s106
      %p108 = scmp.eq.s32.totalorder %s19, 0
      %p109 = por %p107, %p108
      %s110 = ssub.s32 %s20, %s32
      %s111 = ssub.s32 %s21, %s28
      %s112 = sor.u32 %s110, %s111
      %p113 = scmp.eq.s32.totalorder %s112, 0
      %s115 = sadd.s32 %s114, 1
      %s116 = scalar_select %p113, %s114, %s115
      %p119 = pneg %p113
      %p120 = scmp.eq.s32.totalorder %s13, 1
      %p121 = por %p119, %p120
      %p122 = scmp.ne.s32.totalorder %s114, %s117
      %p123 = scmp.eq.s32.totalorder %s13, 0
      %p124 = por %p122, %p123
      %p125 = scmp.ne.s32.totalorder %s114, %s117
      %p126 = scmp.eq.s32.totalorder %s18, 1
      %p127 = por %p125, %p126
      %p128 = scmp.ne.s32.totalorder %s117, %s118
      %p129 = scmp.eq.s32.totalorder %s18, 0
      %p130 = por %p128, %p129
      %p131 = scmp.ne.s32.totalorder %s117, %s118
      %p132 = scmp.eq.s32.totalorder %s19, 1
      %p133 = por %p131, %p132
      %p135 = scmp.ne.s32.totalorder %s118, %s134
      %p136 = scmp.eq.s32.totalorder %s19, 0
      %p137 = por %p135, %p136
      %p138 = scmp.le.s32.totalorder 1, %s13
      %p139 = scmp.lt.s32.totalorder %s13, 3
      %p140 = pnand %p138, %p139
      %p141 = pneg %p140
      // Predicated region
      $region9: #{tpu_custom_call.1} parent=5 // pred_check
        _
      $region10: #{tpu_custom_call.1} parent=5 // pred_check_branch
        %143 = sbr.rel (%p140) target = $region12
      $region11: #{tpu_custom_call.1} parent=5 // pred_region
        %s144 = ssub.s32 %s13, 1
        // Predicated region
        $region13: #{tpu_custom_call.1} parent=11 // pred_check
          %p145 = pneg %p74
        $region14: #{tpu_custom_call.1} parent=11 // pred_check_branch
          %147 = sbr.rel (%p145) target = $region16
        $region15: #{tpu_custom_call.1} parent=11 // pred_region
          _
        $region16: #{tpu_custom_call.1} parent=11 // pred_fallthru
          _
      $region12: #{tpu_custom_call.1} parent=5 // pred_fallthru
        _
      %p148 = scmp.lt.s32.totalorder %s13, 2
      // Predicated region
      $region17: #{tpu_custom_call.1} parent=5 // pred_check
        %p149 = pneg %p148
      $region18: #{tpu_custom_call.1} parent=5 // pred_check_branch
        %151 = sbr.rel (%p149) target = $region20
      $region19: #{tpu_custom_call.1} parent=5 // pred_region
        // Predicated region
        $region21: #{tpu_custom_call.1} parent=19 // pred_check
          %p152 = pneg %p47
        $region22: #{tpu_custom_call.1} parent=19 // pred_check_branch
          %154 = sbr.rel (%p152) target = $region24
        $region23: #{tpu_custom_call.1} parent=19 // pred_region
          %p155 = scmp.lt.s32.totalorder %s20, 1
          %s156 = scalar_select %p155, %s20, 1
          %p157 = scmp.lt.s32.totalorder %s21, 0
          %s158 = scalar_select %p157, %s21, 0
          %s159 = smul.addr %s156, 2
          %s160 = sadd.s32 %s158, %s159
          %s161 = smul.addr %s160, 4
          %s162 = scalar_lea.vmem %s0, %s161
        $region24: #{tpu_custom_call.1} parent=19 // pred_fallthru
          _
      $region20: #{tpu_custom_call.1} parent=5 // pred_fallthru
        _
      %p163 = scmp.le.s32.totalorder 1, %s13
      %p164 = scmp.lt.s32.totalorder %s13, 3
      %p165 = pnand %p163, %p164
      %p166 = pneg %p165
      // Predicated region
      $region25: #{tpu_custom_call.1} parent=5 // pred_check
        _
      $region26: #{tpu_custom_call.1} parent=5 // pred_check_branch
        %168 = sbr.rel (%p165) target = $region28
      $region27: #{tpu_custom_call.1} parent=5 // pred_region
        %s169 = ssub.s32 %s13, 1
        %p170 = scmp.lt.s32.totalorder %s22, 1
        %s171 = scalar_select %p170, %s22, 1
        %p172 = scmp.lt.s32.totalorder %s23, 0
        %s173 = scalar_select %p172, %s23, 0
        %s174 = smul.addr %s171, 2
        %s175 = sadd.s32 %s173, %s174
        %s176 = smul.addr %s175, 4
        %s177 = scalar_lea.vmem %s0, %s176
        %p178 = pneg %p53
        %p179 = pneg %p50
        %p180 = pneg %p74
        %p181 = pneg %p71
        %p182 = pneg %p102
        %p183 = pneg %p99
        %s184 = sand.u32 %s89, 1
        %s185 = scalar_lea.sflag [#allocation3], %s184
        %s186 = sand.u32 %s89, 1
        %s187 = smul.addr %s186, 4
        %s188 = scalar_lea.vmem [#allocation2], %s187
        %p189 = pneg %p130
        %p190 = pneg %p127
        %p191 = scmp.lt.s32.totalorder %s22, 1
        %s192 = scalar_select %p191, %s22, 1
        %p193 = scmp.lt.s32.totalorder %s23, 0
        %s194 = scalar_select %p193, %s23, 0
        %s195 = sadd.s32 %s194, %s192
        %s196 = smul.addr %s195, 8
        %s197 = scalar_lea.vmem %s3, %s196
        %p198 = scmp.lt.s32.totalorder %s22, 1
        %s199 = scalar_select %p198, %s22, 1
        %p200 = scmp.lt.s32.totalorder %s23, 0
        %s201 = scalar_select %p200, %s23, 0
        %s202 = smul.addr %s199, 2
        %s203 = sadd.s32 %s201, %s202
        %s204 = smul.addr %s203, 4
        %s205 = scalar_lea.vmem %s0, %s204
        %p206 = scmp.lt.s32.totalorder %s22, 1
        %s207 = scalar_select %p206, %s22, 1
        %p208 = scmp.lt.s32.totalorder %s23, 0
        %s209 = scalar_select %p208, %s23, 0
        %s210 = sadd.s32 %s209, %s207
        %s211 = smul.addr %s210, 8
        %s212 = scalar_lea.vmem %s3, %s211
        %v214 = vld [vmem:[%s1] sm:$0xf]
        %v215 = vld [vmem:[%s205] sm:$0xf]
        %v216 = vld [vmem:[%s205 + $0x4] sm:$0x3]
        %v219 = vunpack.c.l.b16 %v215
        %v220 = vunpack.c.l.b16 %v216
        %v221 = vpack.c.b16 %v220, %v219
        %vm222 = vcmask 97280
        %v224 = vsel %vm222, %v214, 0
        %vm226 = vcmask 1045504
        %v228 = vsel %vm226, %v221, 0
        %230 = vmatpush.bf16.msra.mxu0 0
        %231 = vmatpush.bf16.msra.mxu0 0
        %232 = vmatpush.bf16.msra.mxu0 0
        %233 = vmatpush.bf16.msra.mxu0 0
        %234 = vmatpush.bf16.msra.mxu0 0
        %235 = vmatpush.bf16.msra.mxu0 0
        %236 = vmatpush.bf16.msra.mxu0 0
        %237 = vmatpush.bf16.msra.mxu0 %v228
        %238 = vmatmul.bf16.gmra.mxu0 %v224
        %v239 = vpop.f32.mrf.mxu0
        %v240 = vadd.f32 0.0, %v239
        %v241 = vpop.f32.mrf.mxu0
        %242 = vdwg.mxu0
        %v243 = vpack.c.bf16 %v240, %v240
        %244 = vst [vmem:[%s188] sm:$0xf] %v243
        %245 = vadd.xlane.f32.xlu0 %v240
        %v246 = vpop.xlane.xlu0 %245
        %v247 = vmul.f32 %v240, %v240
        %248 = vadd.xlane.f32.xlu0 %v247
        %v249 = vpop.xlane.xlu0 %248
        %vm250 = vcmask 7168
        %v251 = vsel %vm250, %v246, %v249
        %vm252 = vcmask 15360
        %253 = vst.msk [vmem:[%s212] sm:$0xff] %vm252, %v251
        %s254 = sand.u32 %s89, 1
        %s255 = scalar_lea.sflag [#allocation3], %s254
        %s256 = sand.u32 %s89, 1
        %s257 = smul.addr %s256, 4
        %s258 = scalar_lea.vmem [#allocation2], %s257
        %p259 = scmp.lt.s32.totalorder %s22, 1
        %s260 = scalar_select %p259, %s22, 1
        %p261 = scmp.lt.s32.totalorder %s23, 0
        %s262 = scalar_select %p261, %s23, 0
        %s263 = sadd.s32 %s262, %s260
        %s264 = smul.addr %s263, 8
        %s265 = scalar_lea.vmem %s3, %s264
        // Predicated region
        $region29: #{tpu_custom_call.1} parent=27 // pred_check
          %p266 = pneg %p99
        $region30: #{tpu_custom_call.1} parent=27 // pred_check_branch
          %268 = sbr.rel (%p266) target = $region32
        $region31: #{tpu_custom_call.1} parent=27 // pred_region
          %270 = vsyncadd %s255, 0
          %s271 = sadd.s32 %s23, %s22
          %s272 = smul.addr %s271, 4
          %s273 = scalar_lea.hbm %s2, %s272
          %s275 = sshll.u32 %s258, 4
          %s276 = int_to_ptr.vmem [resolvable:$true] %s275
          %s277 = sshll.u32 %s273, 4
          %s278 = int_to_ptr.hbm [resolvable:$true] %s277
          %280 = dma.vmem_to_hbm [thread:$0]  %s276, 64, %s278, %s255
        $region32: #{tpu_custom_call.1} parent=27 // pred_fallthru
          _
        // Predicated region
        $region33: #{tpu_custom_call.1} parent=27 // pred_check
          %p281 = pneg %p127
        $region34: #{tpu_custom_call.1} parent=27 // pred_check_branch
          %283 = sbr.rel (%p281) target = $region36
        $region35: #{tpu_custom_call.1} parent=27 // pred_region
          _
        $region36: #{tpu_custom_call.1} parent=27 // pred_fallthru
          _
      $region28: #{tpu_custom_call.1} parent=5 // pred_fallthru
        _
      %p284 = scmp.le.s32.totalorder 2, %s13
      // Predicated region
      $region37: #{tpu_custom_call.1} parent=5 // pred_check
        %p285 = pneg %p284
      $region38: #{tpu_custom_call.1} parent=5 // pred_check_branch
        %287 = sbr.rel (%p285) target = $region40
      $region39: #{tpu_custom_call.1} parent=5 // pred_region
        %s288 = ssub.s32 %s13, 2
        // Predicated region
        $region41: #{tpu_custom_call.1} parent=39 // pred_check
          %p289 = pneg %p105
        $region42: #{tpu_custom_call.1} parent=39 // pred_check_branch
          %291 = sbr.rel (%p289) target = $region44
        $region43: #{tpu_custom_call.1} parent=39 // pred_region
          %s292 = sand.u32 %s90, 1
          %s293 = scalar_lea.sflag [#allocation3], %s292
          %s294 = sand.u32 %s90, 1
          %s295 = smul.addr %s294, 4
          %s296 = scalar_lea.vmem [#allocation2], %s295
          %298 = dma.done %s293, 64
        $region44: #{tpu_custom_call.1} parent=39 // pred_fallthru
          _
        // Predicated region
        $region45: #{tpu_custom_call.1} parent=39 // pred_check
          %p299 = pneg %p133
        $region46: #{tpu_custom_call.1} parent=39 // pred_check_branch
          %301 = sbr.rel (%p299) target = $region48
        $region47: #{tpu_custom_call.1} parent=39 // pred_region
          %p302 = scmp.lt.s32.totalorder %s24, 1
          %s303 = scalar_select %p302, %s24, 1
          %p304 = scmp.lt.s32.totalorder %s25, 0
          %s305 = scalar_select %p304, %s25, 0
          %s306 = sadd.s32 %s305, %s303
          %s307 = smul.addr %s306, 8
          %s308 = scalar_lea.vmem %s3, %s307
        $region48: #{tpu_custom_call.1} parent=39 // pred_fallthru
          _
      $region40: #{tpu_custom_call.1} parent=5 // pred_fallthru
        _
    $region6: #{tpu_custom_call.1} parent=1 // loop_footer
      %s17 = sadd.s32 1, %s13
    $region7: #{tpu_custom_call.1} parent=1 // loop_footer_branch
      %12 = sbr.rel target = $region3
    $region8: #{tpu_custom_call.1} parent=1 // loop_exit
      _
    %309 = vsyncpa [#allocation3], 1
    %s310 = scalar_lea.sflag [#allocation3], 1
    %311 = vsyncpa %s310, 1

</llo_original>
